<compile_context>
chip_gen: v7x
topology: tpu7x:2x2x1
jax: 0.10.0
libtpu: 0.0.40
codegen_flags: <defaults>
</compile_context>

<pallas_src>
import math

import jax
import jax.numpy as jnp
from jax.experimental import pallas as pl
from jax.experimental.pallas import tpu as pltpu


def _round_up(n, m):
    return ((n + m - 1) // m) * m


def _pick_batch_tile(B):
    """Largest batch tile (multiple of 16) bounding padding waste to ~10%, preferring
    >=2 tiles (so both v7x TensorCores get work) whenever the batch allows."""
    for tb in (512, 256, 128, 64, 32, 16):
        Bp = _round_up(B, tb)
        if Bp <= max(int(B * 1.1) + 15, B):
            if Bp // tb >= 2 or B <= 16:
                return tb
    return 16


def _make_kernel(emit_l2):
    def kernel(x_ref, w1_ref, b1_ref, w2_ref, b2_ref, w3_ref, b3_ref, *out_refs):
        scores_ref = out_refs[0]
        cdt = w1_ref.dtype  # compute dtype feeding the MXU / inter-layer elementwise
        zero = jnp.zeros((), cdt)

        # Layer 1: Linear (f32 MXU accumulation) -> bias-add + ReLU in compute dtype.
        h = jnp.dot(x_ref[...], w1_ref[...], preferred_element_type=jnp.float32)
        h = jnp.maximum(h.astype(cdt) + b1_ref[...], zero)

        # Layer 2: Linear + ReLU (this is the embedding / l2scores).
        h = jnp.dot(h, w2_ref[...], preferred_element_type=jnp.float32)
        h = jnp.maximum(h.astype(cdt) + b2_ref[...], zero)
        if emit_l2:
            out_refs[1][...] = h.astype(out_refs[1].dtype)

        # Layer 3: Linear (no activation); bias add in f32, scores emitted in f32.
        s = jnp.dot(h, w3_ref[...], preferred_element_type=jnp.float32)
        scores_ref[...] = (s + b3_ref[...].astype(jnp.float32)).astype(scores_ref.dtype)

    return kernel


def _pad2d(a, rows, cols, dtype):
    a = a.astype(dtype)
    return jnp.pad(a, ((0, rows - a.shape[0]), (0, cols - a.shape[1])))


def three_layer_net(x, params, last=False, compute_dtype=jnp.bfloat16, embedding_dtype=None):
    """Forward pass of ThreeLayerNet.

    x:      (B, input_dim) float32
    params: dict with w1 (D,h1), b1 (1,h1), w2 (h1,h2), b2 (1,h2), w3 (h2,C), b3 (1,C)
    Returns scores (B, C) f32; if last=True also returns l2scores (B, h2).
    """
    B, D = x.shape
    h1 = params["w1"].shape[1]
    h2 = params["w2"].shape[1]
    C = params["w3"].shape[1]
    cdt = jnp.dtype(compute_dtype)
    emb_dt = jnp.dtype(embedding_dtype) if embedding_dtype is not None else cdt

    # Lane-dense zero padding of the feature/contraction axes (exact: zeros add nothing).
    Dp = _round_up(D, 128)
    h1p = _round_up(h1, 128)
    h2p = _round_up(h2, 128)
    Cp = _round_up(C, 128)

    TB = _pick_batch_tile(B)
    Bp = _round_up(B, TB)

    xp = _pad2d(x, Bp, Dp, cdt)
    w1p = _pad2d(params["w1"], Dp, h1p, cdt)
    w2p = _pad2d(params["w2"], h1p, h2p, cdt)
    w3p = _pad2d(params["w3"], h2p, Cp, cdt)
    b1p = _pad2d(params["b1"], 1, h1p, cdt)
    b2p = _pad2d(params["b2"], 1, h2p, cdt)
    b3p = _pad2d(params["b3"], 1, Cp, jnp.float32)  # added to the f32 accumulator

    grid = (Bp // TB,)

    out_shapes = [jax.ShapeDtypeStruct((Bp, Cp), jnp.float32)]
    out_tiles = [(TB, Cp)]
    if last:
        out_shapes.append(jax.ShapeDtypeStruct((Bp, h2p), emb_dt))
        out_tiles.append((TB, h2p))

    in_arrays = (xp, w1p, b1p, w2p, b2p, w3p, b3p)

    # ---- Explicit VMEM budget (default scoped limit is only 16/32 MiB) ----------------
    csz = cdt.itemsize
    resident_bytes = (Dp * h1p + h1p * h2p + h2p * Cp + h1p + h2p) * csz + Cp * 4
    x_stream_bytes = 2 * TB * Dp * csz                               # double-buffered x tile
    out_stream_bytes = 2 * sum(TB * t[1] * jnp.dtype(s.dtype).itemsize
                               for t, s in zip(out_tiles, out_shapes))
    interm_bytes = 3 * TB * max(h1p, h2p) * 4                        # f32 accumulators / casts
    budget = resident_bytes + x_stream_bytes + out_stream_bytes + interm_bytes + (4 << 20)

    try:
        phys_vmem = pltpu.get_tpu_info().vmem_capacity_bytes         # per TensorCore
    except Exception:
        phys_vmem = 64 << 20                                         # conservative (v7x)
    vmem_cap = int(phys_vmem * 0.9)
    # TODO(synk): if `budget` (dominated by resident weights) exceeds `vmem_cap` (e.g. very
    # large hidden dims on v7x's 64 MiB/TC), switch to a K-tiled reduction grid axis with
    # streamed weights + f32 accumulator instead of the all-resident-weights strategy.
    vmem_limit = min(max(budget, 32 << 20), vmem_cap)

    in_bytes = sum(int(a.size) * a.dtype.itemsize for a in in_arrays)
    out_bytes = sum(int(math.prod(s.shape)) * jnp.dtype(s.dtype).itemsize for s in out_shapes)
    cost = pl.CostEstimate(
        flops=2 * Bp * (Dp * h1p + h1p * h2p + h2p * Cp),
        transcendentals=0,
        bytes_accessed=in_bytes + out_bytes,
    )

    def build(single_buffer_weights):
        tile = lambda shape: pl.BlockSpec(shape, lambda i: (i, 0))    # streamed per batch tile
        if single_buffer_weights:
            # Constant index_map -> DMA'd once; single buffer halves resident-weight VMEM.
            resident = lambda shape: pl.BlockSpec(
                shape, lambda i: (0, 0), pipeline_mode=pl.Buffered(1))
        else:
            resident = lambda shape: pl.BlockSpec(shape, lambda i: (0, 0))
        return pl.pallas_call(
            _make_kernel(last),
            out_shape=tuple(out_shapes),
            grid=grid,
            in_specs=[
                tile((TB, Dp)),
                resident((Dp, h1p)), resident((1, h1p)),
                resident((h1p, h2p)), resident((1, h2p)),
                resident((h2p, Cp)), resident((1, Cp)),
            ],
            out_specs=tuple(tile(t) for t in out_tiles),
            compiler_params=pltpu.CompilerParams(
                dimension_semantics=("parallel",),
                vmem_limit_bytes=vmem_limit,
            ),
            cost_estimate=cost,
        )

    try:
        outs = build(single_buffer_weights=True)(*in_arrays)
    except Exception:
        # Fallback for JAX versions that reject pipeline_mode=pl.Buffered(1) on inputs;
        # identical kernel with default (double) buffering on the resident weights.
        outs = build(single_buffer_weights=False)(*in_arrays)

    scores = outs[0][:B, :C]
    if last:
        l2scores = outs[1][:B, :h2]
        return scores, l2scores
    return scores


def init_params(key, input_dim, num_classes, h1, h2):
    """Deterministic init mimicking nn.Linear's U(-1/sqrt(fan_in), 1/sqrt(fan_in))."""
    ks = jax.random.split(key, 6)

    def lin(kw, kb, fan_in, fan_out):
        bound = 1.0 / jnp.sqrt(jnp.float32(fan_in))
        w = jax.random.uniform(kw, (fan_in, fan_out), jnp.float32, -bound, bound)
        b = jax.random.uniform(kb, (1, fan_out), jnp.float32, -bound, bound)
        return w, b

    w1, b1 = lin(ks[0], ks[1], input_dim, h1)
    w2, b2 = lin(ks[2], ks[3], h1, h2)
    w3, b3 = lin(ks[4], ks[5], h2, num_classes)
    return dict(w1=w1, b1=b1, w2=w2, b2=b2, w3=w3, b3=b3)


if __name__ == "__main__":
    key = jax.random.PRNGKey(0)
    k_x, k_p = jax.random.split(key)

    batch, input_dim, num_classes, h1, h2 = 8, 32, 10, 64, 32

    x = jax.random.normal(k_x, (batch, input_dim), dtype=jnp.float32)
    params = init_params(k_p, input_dim, num_classes, h1, h2)

    # Plain-JAX reference
    ref1 = jnp.maximum(x @ params["w1"] + params["b1"], 0.0)
    ref2 = jnp.maximum(ref1 @ params["w2"] + params["b2"], 0.0)
    ref_scores = ref2 @ params["w3"] + params["b3"]

    # 1) f32 compute path: tight check
    scores_f32, l2_f32 = three_layer_net(x, params, last=True, compute_dtype=jnp.float32)
    jax.block_until_ready((scores_f32, l2_f32))
    assert scores_f32.shape == (batch, num_classes)
    assert l2_f32.shape == (batch, h2)
    assert jnp.allclose(scores_f32, ref_scores, atol=1e-5)
    assert jnp.allclose(l2_f32, ref2, atol=1e-5)

    # 2) bf16 compute path (default, perf-oriented): loose check (embedding comes back bf16)
    scores_bf16, l2_bf16 = three_layer_net(x, params, last=True)
    jax.block_until_ready((scores_bf16, l2_bf16))
    assert jnp.allclose(scores_bf16, ref_scores, atol=5e-2, rtol=5e-2)
    assert jnp.allclose(l2_bf16.astype(jnp.float32), ref2, atol=5e-2, rtol=5e-2)

    # 3) last=False variant skips the embedding writeback entirely
    scores_only = three_layer_net(x, params, last=False, compute_dtype=jnp.float32)
    jax.block_until_ready(scores_only)
    assert scores_only.shape == (batch, num_classes)
    assert jnp.allclose(scores_only, ref_scores, atol=1e-5)

    print("KERNEL_OK")
</pallas_src>

<mosaic_0001>
module attributes {stable_mosaic.version = 11 : i64} {
  func.func @kernel(%arg0: i32, %arg1: memref<16x128xf32, #tpu.memory_space<vmem>>, %arg2: memref<128x128xf32, #tpu.memory_space<vmem>>, %arg3: memref<1x128xf32, #tpu.memory_space<vmem>>, %arg4: memref<128x128xf32, #tpu.memory_space<vmem>>, %arg5: memref<1x128xf32, #tpu.memory_space<vmem>>, %arg6: memref<128x128xf32, #tpu.memory_space<vmem>>, %arg7: memref<1x128xf32, #tpu.memory_space<vmem>>, %arg8: memref<16x128xf32, #tpu.memory_space<vmem>>, %arg9: memref<16x128xf32, #tpu.memory_space<vmem>>) attributes {dimension_semantics = [#tpu.dimension_semantics<parallel>], iteration_bounds = array<i64: 1>, scalar_prefetch = 0 : i64, scratch_operands = 0 : i64, tpu.core_type = #tpu.core_type<tc>, window_params = [{transform_indices = @transform_0, window_bounds = array<i64: 16, 128>}, {pipeline_mode = #tpu.pipeline_mode<synchronous>, transform_indices = @transform_1, window_bounds = array<i64: 128, 128>}, {pipeline_mode = #tpu.pipeline_mode<synchronous>, transform_indices = @transform_2, window_bounds = array<i64: 1, 128>}, {pipeline_mode = #tpu.pipeline_mode<synchronous>, transform_indices = @transform_3, window_bounds = array<i64: 128, 128>}, {pipeline_mode = #tpu.pipeline_mode<synchronous>, transform_indices = @transform_4, window_bounds = array<i64: 1, 128>}, {pipeline_mode = #tpu.pipeline_mode<synchronous>, transform_indices = @transform_5, window_bounds = array<i64: 128, 128>}, {pipeline_mode = #tpu.pipeline_mode<synchronous>, transform_indices = @transform_6, window_bounds = array<i64: 1, 128>}, {transform_indices = @transform_7, window_bounds = array<i64: 16, 128>}, {transform_indices = @transform_8, window_bounds = array<i64: 16, 128>}]} {
    %c0 = arith.constant 0 : index
    %c0_0 = arith.constant 0 : index
    %0 = vector.load %arg1[%c0, %c0_0] : memref<16x128xf32, #tpu.memory_space<vmem>>, vector<16x128xf32>
    %c0_1 = arith.constant 0 : index
    %c0_2 = arith.constant 0 : index
    %1 = vector.load %arg2[%c0_1, %c0_2] : memref<128x128xf32, #tpu.memory_space<vmem>>, vector<128x128xf32>
    %cst = arith.constant dense<0.000000e+00> : vector<16x128xf32>
    %2 = tpu.matmul %0, %1, %cst {dimension_numbers = #tpu.dot_dimension_numbers<[1], [0], [0], [1], [0, 0, 1, 1], [], []>} : vector<16x128xf32>, vector<128x128xf32>, vector<16x128xf32> -> vector<16x128xf32>
    %c0_3 = arith.constant 0 : index
    %c0_4 = arith.constant 0 : index
    %3 = vector.load %arg3[%c0_3, %c0_4] : memref<1x128xf32, #tpu.memory_space<vmem>>, vector<1x128xf32>
    %4 = vector.broadcast %3 : vector<1x128xf32> to vector<16x128xf32>
    %5 = arith.addf %2, %4 : vector<16x128xf32>
    %cst_5 = arith.constant 0.000000e+00 : f32
    %6 = vector.broadcast %cst_5 : f32 to vector<16x128xf32>
    %7 = arith.maximumf %5, %6 : vector<16x128xf32>
    %c0_6 = arith.constant 0 : index
    %c0_7 = arith.constant 0 : index
    %8 = vector.load %arg4[%c0_6, %c0_7] : memref<128x128xf32, #tpu.memory_space<vmem>>, vector<128x128xf32>
    %cst_8 = arith.constant dense<0.000000e+00> : vector<16x128xf32>
    %9 = tpu.matmul %7, %8, %cst_8 {dimension_numbers = #tpu.dot_dimension_numbers<[1], [0], [0], [1], [0, 0, 1, 1], [], []>} : vector<16x128xf32>, vector<128x128xf32>, vector<16x128xf32> -> vector<16x128xf32>
    %c0_9 = arith.constant 0 : index
    %c0_10 = arith.constant 0 : index
    %10 = vector.load %arg5[%c0_9, %c0_10] : memref<1x128xf32, #tpu.memory_space<vmem>>, vector<1x128xf32>
    %11 = vector.broadcast %10 : vector<1x128xf32> to vector<16x128xf32>
    %12 = arith.addf %9, %11 : vector<16x128xf32>
    %cst_11 = arith.constant 0.000000e+00 : f32
    %13 = vector.broadcast %cst_11 : f32 to vector<16x128xf32>
    %14 = arith.maximumf %12, %13 : vector<16x128xf32>
    %c0_12 = arith.constant 0 : index
    %c0_13 = arith.constant 0 : index
    %15 = vector.load %arg9[%c0_12, %c0_13] : memref<16x128xf32, #tpu.memory_space<vmem>>, vector<16x128xf32>
    tpu.vector_store %arg9[%c0_12, %c0_13], %14 {strides = array<i32>} : memref<16x128xf32, #tpu.memory_space<vmem>>, vector<16x128xf32>,
    %c0_14 = arith.constant 0 : index
    %c0_15 = arith.constant 0 : index
    %16 = vector.load %arg6[%c0_14, %c0_15] : memref<128x128xf32, #tpu.memory_space<vmem>>, vector<128x128xf32>
    %cst_16 = arith.constant dense<0.000000e+00> : vector<16x128xf32>
    %17 = tpu.matmul %14, %16, %cst_16 {dimension_numbers = #tpu.dot_dimension_numbers<[1], [0], [0], [1], [0, 0, 1, 1], [], []>} : vector<16x128xf32>, vector<128x128xf32>, vector<16x128xf32> -> vector<16x128xf32>
    %c0_17 = arith.constant 0 : index
    %c0_18 = arith.constant 0 : index
    %18 = vector.load %arg7[%c0_17, %c0_18] : memref<1x128xf32, #tpu.memory_space<vmem>>, vector<1x128xf32>
    %19 = vector.broadcast %18 : vector<1x128xf32> to vector<16x128xf32>
    %20 = arith.addf %17, %19 : vector<16x128xf32>
    %c0_19 = arith.constant 0 : index
    %c0_20 = arith.constant 0 : index
    %21 = vector.load %arg8[%c0_19, %c0_20] : memref<16x128xf32, #tpu.memory_space<vmem>>, vector<16x128xf32>
    tpu.vector_store %arg8[%c0_19, %c0_20], %20 {strides = array<i32>} : memref<16x128xf32, #tpu.memory_space<vmem>>, vector<16x128xf32>,
    return
  }
  func.func @transform_0(%arg0: i32) -> (i32, i32) {
    %c0_i32 = arith.constant 0 : i32
    %c0_i32_0 = arith.constant 0 : i32
    return %arg0, %c0_i32 : i32, i32
  }
  func.func @transform_1(%arg0: i32) -> (i32, i32) {
    %c0_i32 = arith.constant 0 : i32
    %c0_i32_0 = arith.constant 0 : i32
    %c0_i32_1 = arith.constant 0 : i32
    return %c0_i32, %c0_i32_0 : i32, i32
  }
  func.func @transform_2(%arg0: i32) -> (i32, i32) {
    %c0_i32 = arith.constant 0 : i32
    %c0_i32_0 = arith.constant 0 : i32
    %c0_i32_1 = arith.constant 0 : i32
    return %c0_i32, %c0_i32_0 : i32, i32
  }
  func.func @transform_3(%arg0: i32) -> (i32, i32) {
    %c0_i32 = arith.constant 0 : i32
    %c0_i32_0 = arith.constant 0 : i32
    %c0_i32_1 = arith.constant 0 : i32
    return %c0_i32, %c0_i32_0 : i32, i32
  }
  func.func @transform_4(%arg0: i32) -> (i32, i32) {
    %c0_i32 = arith.constant 0 : i32
    %c0_i32_0 = arith.constant 0 : i32
    %c0_i32_1 = arith.constant 0 : i32
    return %c0_i32, %c0_i32_0 : i32, i32
  }
  func.func @transform_5(%arg0: i32) -> (i32, i32) {
    %c0_i32 = arith.constant 0 : i32
    %c0_i32_0 = arith.constant 0 : i32
    %c0_i32_1 = arith.constant 0 : i32
    return %c0_i32, %c0_i32_0 : i32, i32
  }
  func.func @transform_6(%arg0: i32) -> (i32, i32) {
    %c0_i32 = arith.constant 0 : i32
    %c0_i32_0 = arith.constant 0 : i32
    %c0_i32_1 = arith.constant 0 : i32
    return %c0_i32, %c0_i32_0 : i32, i32
  }
  func.func @transform_7(%arg0: i32) -> (i32, i32) {
    %c0_i32 = arith.constant 0 : i32
    %c0_i32_0 = arith.constant 0 : i32
    return %arg0, %c0_i32 : i32, i32
  }
  func.func @transform_8(%arg0: i32) -> (i32, i32) {
    %c0_i32 = arith.constant 0 : i32
    %c0_i32_0 = arith.constant 0 : i32
    return %arg0, %c0_i32 : i32, i32
  }
}

module attributes {stable_mosaic.version = 11 : i64} {
  func.func @kernel(%arg0: i32, %arg1: memref<16x128xf32, #tpu.memory_space<vmem>>, %arg2: memref<128x128xf32, #tpu.memory_space<vmem>>, %arg3: memref<1x128xf32, #tpu.memory_space<vmem>>, %arg4: memref<128x128xf32, #tpu.memory_space<vmem>>, %arg5: memref<1x128xf32, #tpu.memory_space<vmem>>, %arg6: memref<128x128xf32, #tpu.memory_space<vmem>>, %arg7: memref<1x128xf32, #tpu.memory_space<vmem>>, %arg8: memref<16x128xf32, #tpu.memory_space<vmem>>, %arg9: memref<16x128xf32, #tpu.memory_space<vmem>>) attributes {dimension_semantics = [#tpu.dimension_semantics<parallel>], iteration_bounds = array<i64: 1>, scalar_prefetch = 0 : i64, scratch_operands = 0 : i64, tpu.core_type = #tpu.core_type<tc>, window_params = [{transform_indices = @transform_0, window_bounds = array<i64: 16, 128>}, {pipeline_mode = #tpu.pipeline_mode<synchronous>, transform_indices = @transform_1, window_bounds = array<i64: 128, 128>}, {pipeline_mode = #tpu.pipeline_mode<synchronous>, transform_indices = @transform_2, window_bounds = array<i64: 1, 128>}, {pipeline_mode = #tpu.pipeline_mode<synchronous>, transform_indices = @transform_3, window_bounds = array<i64: 128, 128>}, {pipeline_mode = #tpu.pipeline_mode<synchronous>, transform_indices = @transform_4, window_bounds = array<i64: 1, 128>}, {pipeline_mode = #tpu.pipeline_mode<synchronous>, transform_indices = @transform_5, window_bounds = array<i64: 128, 128>}, {pipeline_mode = #tpu.pipeline_mode<synchronous>, transform_indices = @transform_6, window_bounds = array<i64: 1, 128>}, {transform_indices = @transform_7, window_bounds = array<i64: 16, 128>}, {transform_indices = @transform_8, window_bounds = array<i64: 16, 128>}]} {
    %c0 = arith.constant 0 : index
    %c0_0 = arith.constant 0 : index
    %0 = vector.load %arg1[%c0, %c0_0] : memref<16x128xf32, #tpu.memory_space<vmem>>, vector<16x128xf32>
    %c0_1 = arith.constant 0 : index
    %c0_2 = arith.constant 0 : index
    %1 = vector.load %arg2[%c0_1, %c0_2] : memref<128x128xf32, #tpu.memory_space<vmem>>, vector<128x128xf32>
    %cst = arith.constant dense<0.000000e+00> : vector<16x128xf32>
    %2 = tpu.matmul %0, %1, %cst {dimension_numbers = #tpu.dot_dimension_numbers<[1], [0], [0], [1], [0, 0, 1, 1], [], []>} : vector<16x128xf32>, vector<128x128xf32>, vector<16x128xf32> -> vector<16x128xf32>
    %c0_3 = arith.constant 0 : index
    %c0_4 = arith.constant 0 : index
    %3 = vector.load %arg3[%c0_3, %c0_4] : memref<1x128xf32, #tpu.memory_space<vmem>>, vector<1x128xf32>
    %4 = vector.broadcast %3 : vector<1x128xf32> to vector<16x128xf32>
    %5 = arith.addf %2, %4 : vector<16x128xf32>
    %cst_5 = arith.constant 0.000000e+00 : f32
    %6 = vector.broadcast %cst_5 : f32 to vector<16x128xf32>
    %7 = arith.maximumf %5, %6 : vector<16x128xf32>
    %c0_6 = arith.constant 0 : index
    %c0_7 = arith.constant 0 : index
    %8 = vector.load %arg4[%c0_6, %c0_7] : memref<128x128xf32, #tpu.memory_space<vmem>>, vector<128x128xf32>
    %cst_8 = arith.constant dense<0.000000e+00> : vector<16x128xf32>
    %9 = tpu.matmul %7, %8, %cst_8 {dimension_numbers = #tpu.dot_dimension_numbers<[1], [0], [0], [1], [0, 0, 1, 1], [], []>} : vector<16x128xf32>, vector<128x128xf32>, vector<16x128xf32> -> vector<16x128xf32>
    %c0_9 = arith.constant 0 : index
    %c0_10 = arith.constant 0 : index
    %10 = vector.load %arg5[%c0_9, %c0_10] : memref<1x128xf32, #tpu.memory_space<vmem>>, vector<1x128xf32>
    %11 = vector.broadcast %10 : vector<1x128xf32> to vector<16x128xf32>
    %12 = arith.addf %9, %11 : vector<16x128xf32>
    %cst_11 = arith.constant 0.000000e+00 : f32
    %13 = vector.broadcast %cst_11 : f32 to vector<16x128xf32>
    %14 = arith.maximumf %12, %13 : vector<16x128xf32>
    %c0_12 = arith.constant 0 : index
    %c0_13 = arith.constant 0 : index
    %15 = vector.load %arg9[%c0_12, %c0_13] : memref<16x128xf32, #tpu.memory_space<vmem>>, vector<16x128xf32>
    tpu.vector_store %arg9[%c0_12, %c0_13], %14 {strides = array<i32>} : memref<16x128xf32, #tpu.memory_space<vmem>>, vector<16x128xf32>,
    %c0_14 = arith.constant 0 : index
    %c0_15 = arith.constant 0 : index
    %16 = vector.load %arg6[%c0_14, %c0_15] : memref<128x128xf32, #tpu.memory_space<vmem>>, vector<128x128xf32>
    %cst_16 = arith.constant dense<0.000000e+00> : vector<16x128xf32>
    %17 = tpu.matmul %14, %16, %cst_16 {dimension_numbers = #tpu.dot_dimension_numbers<[1], [0], [0], [1], [0, 0, 1, 1], [], []>} : vector<16x128xf32>, vector<128x128xf32>, vector<16x128xf32> -> vector<16x128xf32>
    %c0_17 = arith.constant 0 : index
    %c0_18 = arith.constant 0 : index
    %18 = vector.load %arg7[%c0_17, %c0_18] : memref<1x128xf32, #tpu.memory_space<vmem>>, vector<1x128xf32>
    %19 = vector.broadcast %18 : vector<1x128xf32> to vector<16x128xf32>
    %20 = arith.addf %17, %19 : vector<16x128xf32>
    %c0_19 = arith.constant 0 : index
    %c0_20 = arith.constant 0 : index
    %21 = vector.load %arg8[%c0_19, %c0_20] : memref<16x128xf32, #tpu.memory_space<vmem>>, vector<16x128xf32>
    tpu.vector_store %arg8[%c0_19, %c0_20], %20 {strides = array<i32>} : memref<16x128xf32, #tpu.memory_space<vmem>>, vector<16x128xf32>,
    return
  }
  func.func @transform_0(%arg0: i32) -> (i32, i32) {
    %c0_i32 = arith.constant 0 : i32
    %c0_i32_0 = arith.constant 0 : i32
    return %arg0, %c0_i32 : i32, i32
  }
  func.func @transform_1(%arg0: i32) -> (i32, i32) {
    %c0_i32 = arith.constant 0 : i32
    %c0_i32_0 = arith.constant 0 : i32
    %c0_i32_1 = arith.constant 0 : i32
    return %c0_i32, %c0_i32_0 : i32, i32
  }
  func.func @transform_2(%arg0: i32) -> (i32, i32) {
    %c0_i32 = arith.constant 0 : i32
    %c0_i32_0 = arith.constant 0 : i32
    %c0_i32_1 = arith.constant 0 : i32
    return %c0_i32, %c0_i32_0 : i32, i32
  }
  func.func @transform_3(%arg0: i32) -> (i32, i32) {
    %c0_i32 = arith.constant 0 : i32
    %c0_i32_0 = arith.constant 0 : i32
    %c0_i32_1 = arith.constant 0 : i32
    return %c0_i32, %c0_i32_0 : i32, i32
  }
  func.func @transform_4(%arg0: i32) -> (i32, i32) {
    %c0_i32 = arith.constant 0 : i32
    %c0_i32_0 = arith.constant 0 : i32
    %c0_i32_1 = arith.constant 0 : i32
    return %c0_i32, %c0_i32_0 : i32, i32
  }
  func.func @transform_5(%arg0: i32) -> (i32, i32) {
    %c0_i32 = arith.constant 0 : i32
    %c0_i32_0 = arith.constant 0 : i32
    %c0_i32_1 = arith.constant 0 : i32
    return %c0_i32, %c0_i32_0 : i32, i32
  }
  func.func @transform_6(%arg0: i32) -> (i32, i32) {
    %c0_i32 = arith.constant 0 : i32
    %c0_i32_0 = arith.constant 0 : i32
    %c0_i32_1 = arith.constant 0 : i32
    return %c0_i32, %c0_i32_0 : i32, i32
  }
  func.func @transform_7(%arg0: i32) -> (i32, i32) {
    %c0_i32 = arith.constant 0 : i32
    %c0_i32_0 = arith.constant 0 : i32
    return %arg0, %c0_i32 : i32, i32
  }
  func.func @transform_8(%arg0: i32) -> (i32, i32) {
    %c0_i32 = arith.constant 0 : i32
    %c0_i32_0 = arith.constant 0 : i32
    return %arg0, %c0_i32 : i32, i32
  }
}

</mosaic_0001>

<llo_original>
// kernel: tpu_custom_call.1
$region0: #{tpu_custom_call.1}
  #allocation0 [shape = 'u32[]', space=smem, size = 0x4, offset = 0x4, fixed_abs, tag = 'smem constant byte address 0x4 - core index']
  #allocation1 [shape = 'u32[144,128]{1,0:T(1,128)}', space=vmem, size = 0x12000, scoped, tag = 'internal scratch']
  %s0 = inlined_call_operand.hbm [shape: f32[16,128], index: 0, kind: input, shape index: {}]
  %s1 = inlined_call_operand.hbm [shape: f32[128,128], index: 1, kind: input, shape index: {}]
  %s2 = inlined_call_operand.vmem [shape: f32[1,128], index: 2, kind: input, shape index: {}]
  %s3 = inlined_call_operand.hbm [shape: f32[128,128], index: 3, kind: input, shape index: {}]
  %s4 = inlined_call_operand.vmem [shape: f32[1,128], index: 4, kind: input, shape index: {}]
  %s5 = inlined_call_operand.hbm [shape: f32[128,128], index: 5, kind: input, shape index: {}]
  %s6 = inlined_call_operand.vmem [shape: f32[1,128], index: 6, kind: input, shape index: {}]
  %s7 = inlined_call_operand.hbm [shape: f32[16,128], index: 7, kind: output, shape index: {0}]
  %s8 = inlined_call_operand.hbm [shape: f32[16,128], index: 8, kind: output, shape index: {1}]
  %9 = xla_tuple %s7, %s8
  %s10 = sld [smem:[#allocation0]]
  $region62: #{tpu_custom_call.1} parent=0
    _
  %s12 = ssub.s32 1, %s10
  %s13 = scalar_select 0, %s12, %s10
  $region1: #{tpu_custom_call.1} parent=0
    #allocation2 [shape = 'u8[8192]{0}', space=vmem, size = 0x2000, scoped, tag = 'input window, operand 0, single buffered']
    #allocation3 [shape = 's32[1]{0}', space=sflag, size = 0x4, scoped, tag = 'scoped memory for tpu_custom_call.1']
    #allocation4 [shape = 's32[1]{0}', space=sflag, size = 0x4, scoped, tag = 'scoped memory for tpu_custom_call.1']
    #allocation5 [shape = 'u8[65536]{0}', space=vmem, size = 0x10000, scoped, tag = 'input window, operand 1, single buffered']
    #allocation6 [shape = 's32[1]{0}', space=sflag, size = 0x4, scoped, tag = 'scoped memory for tpu_custom_call.1']
    #allocation7 [shape = 'u8[65536]{0}', space=vmem, size = 0x10000, scoped, tag = 'input window, operand 3, single buffered']
    #allocation8 [shape = 'u8[65536]{0}', space=vmem, size = 0x10000, scoped, tag = 'input window, operand 5, single buffered']
    #allocation9 [shape = 's32[1]{0}', space=sflag, size = 0x4, scoped, tag = 'scoped memory for tpu_custom_call.1']
    #allocation10 [shape = 'u8[8192]{0}', space=vmem, size = 0x2000, scoped, tag = 'output window, operand 0, single buffered']
    #allocation11 [shape = 'u8[8192]{0}', space=vmem, size = 0x2000, scoped, tag = 'output window, operand 1, single buffered']
    #allocation12 [shape = 's32[1]{0}', space=sflag, size = 0x4, scoped, tag = 'scoped memory for tpu_custom_call.1']
    %14 = vsyncpa [#allocation3], 0
    %15 = vsyncpa [#allocation6], 0
    %16 = vsyncpa [#allocation9], 0
    %17 = vsyncpa [#allocation4], 0
    %18 = vsyncpa [#allocation12], 0
    // Predicated region
    $region2: #{tpu_custom_call.1} parent=1 // pred_check
      _
    $region3: #{tpu_custom_call.1} parent=1 // pred_check_branch
      %20 = sbr.rel (0) target = $region5
    $region4: #{tpu_custom_call.1} parent=1 // pred_region
      %s22 = ssub.s32 256, 256
      %23 = vsyncadd [#allocation3], %s22
      %s24 = sshll.u32 [#allocation2], 4
      %s25 = int_to_ptr.vmem [resolvable:$true] %s24
      %30 = dma.hbm_to_vmem [thread:$0]  %s0, 256, %s25, [#allocation3], 128, 128, 8
    $region5: #{tpu_custom_call.1} parent=1 // pred_fallthru
      _
    // Predicated region
    $region6: #{tpu_custom_call.1} parent=1 // pred_check
      _
    $region7: #{tpu_custom_call.1} parent=1 // pred_check_branch
      %32 = sbr.rel (0) target = $region9
    $region8: #{tpu_custom_call.1} parent=1 // pred_region
      %s34 = ssub.s32 2048, 2048
      %35 = vsyncadd [#allocation6], %s34
      %s36 = sshll.u32 [#allocation5], 4
      %s37 = int_to_ptr.vmem [resolvable:$true] %s36
      %42 = dma.hbm_to_vmem [thread:$0]  %s1, 2048, %s37, [#allocation6], 128, 128, 8
    $region9: #{tpu_custom_call.1} parent=1 // pred_fallthru
      _
    // Predicated region
    $region10: #{tpu_custom_call.1} parent=1 // pred_check
      _
    $region11: #{tpu_custom_call.1} parent=1 // pred_check_branch
      %44 = sbr.rel (0) target = $region13
    $region12: #{tpu_custom_call.1} parent=1 // pred_region
      _
    $region13: #{tpu_custom_call.1} parent=1 // pred_fallthru
      _
    // Predicated region
    $region14: #{tpu_custom_call.1} parent=1 // pred_check
      _
    $region15: #{tpu_custom_call.1} parent=1 // pred_check_branch
      %46 = sbr.rel (0) target = $region17
    $region16: #{tpu_custom_call.1} parent=1 // pred_region
      %s48 = ssub.s32 2048, 2048
      %49 = vsyncadd [#allocation6], %s48
      %s50 = sshll.u32 [#allocation7], 4
      %s51 = int_to_ptr.vmem [resolvable:$true] %s50
      %56 = dma.hbm_to_vmem [thread:$0]  %s3, 2048, %s51, [#allocation6], 128, 128, 8
    $region17: #{tpu_custom_call.1} parent=1 // pred_fallthru
      _
    // Predicated region
    $region18: #{tpu_custom_call.1} parent=1 // pred_check
      _
    $region19: #{tpu_custom_call.1} parent=1 // pred_check_branch
      %58 = sbr.rel (0) target = $region21
    $region20: #{tpu_custom_call.1} parent=1 // pred_region
      _
    $region21: #{tpu_custom_call.1} parent=1 // pred_fallthru
      _
    // Predicated region
    $region22: #{tpu_custom_call.1} parent=1 // pred_check
      _
    $region23: #{tpu_custom_call.1} parent=1 // pred_check_branch
      %60 = sbr.rel (0) target = $region25
    $region24: #{tpu_custom_call.1} parent=1 // pred_region
      %s62 = ssub.s32 2048, 2048
      %63 = vsyncadd [#allocation9], %s62
      %s64 = sshll.u32 [#allocation8], 4
      %s65 = int_to_ptr.vmem [resolvable:$true] %s64
      %70 = dma.hbm_to_vmem [thread:$0]  %s5, 2048, %s65, [#allocation9], 128, 128, 8
    $region25: #{tpu_custom_call.1} parent=1 // pred_fallthru
      _
    // Predicated region
    $region26: #{tpu_custom_call.1} parent=1 // pred_check
      _
    $region27: #{tpu_custom_call.1} parent=1 // pred_check_branch
      %72 = sbr.rel (0) target = $region29
    $region28: #{tpu_custom_call.1} parent=1 // pred_region
      _
    $region29: #{tpu_custom_call.1} parent=1 // pred_fallthru
      _
    // Predicated region
    $region30: #{tpu_custom_call.1} parent=1 // pred_check
      _
    $region31: #{tpu_custom_call.1} parent=1 // pred_check_branch
      %74 = sbr.rel (0) target = $region33
    $region32: #{tpu_custom_call.1} parent=1 // pred_region
      %75 = dma.done [#allocation3], 256
    $region33: #{tpu_custom_call.1} parent=1 // pred_fallthru
      _
    // Predicated region
    $region34: #{tpu_custom_call.1} parent=1 // pred_check
      _
    $region35: #{tpu_custom_call.1} parent=1 // pred_check_branch
      %77 = sbr.rel (0) target = $region37
    $region36: #{tpu_custom_call.1} parent=1 // pred_region
      %78 = dma.done [#allocation6], 2048
    $region37: #{tpu_custom_call.1} parent=1 // pred_fallthru
      _
    // Predicated region
    $region38: #{tpu_custom_call.1} parent=1 // pred_check
      _
    $region39: #{tpu_custom_call.1} parent=1 // pred_check_branch
      %80 = sbr.rel (0) target = $region41
    $region40: #{tpu_custom_call.1} parent=1 // pred_region
      %81 = dma.done [#allocation6], 2048
    $region41: #{tpu_custom_call.1} parent=1 // pred_fallthru
      _
    // Predicated region
    $region42: #{tpu_custom_call.1} parent=1 // pred_check
      _
    $region43: #{tpu_custom_call.1} parent=1 // pred_check_branch
      %83 = sbr.rel (0) target = $region45
    $region44: #{tpu_custom_call.1} parent=1 // pred_region
      %84 = dma.done [#allocation9], 2048
    $region45: #{tpu_custom_call.1} parent=1 // pred_fallthru
      _
    %v85 = vld [vmem:[#allocation2] sm:$0xff]
    %v86 = vld [vmem:[#allocation2 + $0x8] sm:$0xff]
    %v87 = vld [vmem:[#allocation5] sm:$0xff]
    %v88 = vld [vmem:[#allocation5 + $0x8] sm:$0xff]
    %v89 = vld [vmem:[#allocation5 + $0x10] sm:$0xff]
    %v90 = vld [vmem:[#allocation5 + $0x18] sm:$0xff]
    %v91 = vld [vmem:[#allocation5 + $0x20] sm:$0xff]
    %v92 = vld [vmem:[#allocation5 + $0x28] sm:$0xff]
    %v93 = vld [vmem:[#allocation5 + $0x30] sm:$0xff]
    %v94 = vld [vmem:[#allocation5 + $0x38] sm:$0xff]
    %v95 = vld [vmem:[#allocation5 + $0x40] sm:$0xff]
    %v96 = vld [vmem:[#allocation5 + $0x48] sm:$0xff]
    %v97 = vld [vmem:[#allocation5 + $0x50] sm:$0xff]
    %v98 = vld [vmem:[#allocation5 + $0x58] sm:$0xff]
    %v99 = vld [vmem:[#allocation5 + $0x60] sm:$0xff]
    %v100 = vld [vmem:[#allocation5 + $0x68] sm:$0xff]
    %v101 = vld [vmem:[#allocation5 + $0x70] sm:$0xff]
    %v102 = vld [vmem:[#allocation5 + $0x78] sm:$0xff]
    %v103 = vld [vmem:[%s2] sm:$0x1]
    %v105 = vlaneseq
    %v106 = vshrl.u32 %v105, 7
    %v107 = vsub.s32 0, %v106
    %v108 = vrot.slane %v103, %v107
    %110 = vmatprep.subr.mxu0 0.0
    %111 = vmatpush1.msra.mxu0 %v87
    %112 = vmatprep.subr.mxu0 0.0
    %113 = vmatpush1.msra.mxu0 %v88
    %114 = vmatprep.subr.mxu0 0.0
    %115 = vmatpush1.msra.mxu0 %v89
    %116 = vmatprep.subr.mxu0 0.0
    %117 = vmatpush1.msra.mxu0 %v90
    %118 = vmatprep.subr.mxu0 0.0
    %119 = vmatpush1.msra.mxu0 %v91
    %120 = vmatprep.subr.mxu0 0.0
    %121 = vmatpush1.msra.mxu0 %v92
    %122 = vmatprep.subr.mxu0 0.0
    %123 = vmatpush1.msra.mxu0 %v93
    %124 = vmatprep.subr.mxu0 0.0
    %125 = vmatpush1.msra.mxu0 %v94
    %126 = vmatprep.subr.mxu0 0.0
    %127 = vmatpush1.msra.mxu0 %v95
    %128 = vmatprep.subr.mxu0 0.0
    %129 = vmatpush1.msra.mxu0 %v96
    %130 = vmatprep.subr.mxu0 0.0
    %131 = vmatpush1.msra.mxu0 %v97
    %132 = vmatprep.subr.mxu0 0.0
    %133 = vmatpush1.msra.mxu0 %v98
    %134 = vmatprep.subr.mxu0 0.0
    %135 = vmatpush1.msra.mxu0 %v99
    %136 = vmatprep.subr.mxu0 0.0
    %137 = vmatpush1.msra.mxu0 %v100
    %138 = vmatprep.subr.mxu0 0.0
    %139 = vmatpush1.msra.mxu0 %v101
    %140 = vmatprep.subr.mxu0 0.0
    %141 = vmatpush1.msra.mxu0 %v102
    %142 = vmatprep.subr.mxu0 0.0
    %143 = vmatpush1.msra.mxu0 0.0
    %144 = vmatprep.subr.mxu0 0.0
    %145 = vmatpush1.msra.mxu0 0.0
    %146 = vmatprep.subr.mxu0 0.0
    %147 = vmatpush1.msra.mxu0 0.0
    %148 = vmatprep.subr.mxu0 0.0
    %149 = vmatpush1.msra.mxu0 0.0
    %150 = vmatprep.subr.mxu0 0.0
    %151 = vmatpush1.msra.mxu0 0.0
    %152 = vmatprep.subr.mxu0 0.0
    %153 = vmatpush1.msra.mxu0 0.0
    %154 = vmatprep.subr.mxu0 0.0
    %155 = vmatpush1.msra.mxu0 0.0
    %156 = vmatprep.subr.mxu0 0.0
    %157 = vmatpush1.msra.mxu0 0.0
    %158 = vmatprep.subr.mxu0 0.0
    %159 = vmatpush1.msra.mxu0 0.0
    %160 = vmatprep.subr.mxu0 0.0
    %161 = vmatpush1.msra.mxu0 0.0
    %162 = vmatprep.subr.mxu0 0.0
    %163 = vmatpush1.msra.mxu0 0.0
    %164 = vmatprep.subr.mxu0 0.0
    %165 = vmatpush1.msra.mxu0 0.0
    %166 = vmatprep.subr.mxu0 0.0
    %167 = vmatpush1.msra.mxu0 0.0
    %168 = vmatprep.subr.mxu0 0.0
    %169 = vmatpush1.msra.mxu0 0.0
    %170 = vmatprep.subr.mxu0 0.0
    %171 = vmatpush1.msra.mxu0 0.0
    %172 = vmatprep.subr.mxu0 0.0
    %173 = vmatpush1.msra.mxu0 0.0
    %174 = vmatprep.mubr.f32.mxu0 0.0
    %175 = vmatmul.mubr.f32.gmra.mrb[0].mxu0 %v85
    %v176 = vpop.f32.mrb[0].mxu0
    %v177 = vadd.f32 %v108, %v176
    %v178 = vpop.f32.mrb[0].mxu0
    %179 = vmatprep.mubr.f32.mxu0 0.0
    %180 = vmatmul.mubr.f32.gmra.mrb[0].mxu0 %v86
    %v181 = vpop.f32.mrb[0].mxu0
    %v182 = vadd.f32 %v108, %v181
    %v183 = vpop.f32.mrb[0].mxu0
    %184 = vdwg.mxu0
    %v185 = vmax.f32 %v177, 0.0
    %v186 = vmax.f32 %v182, 0.0
    %v187 = vld [vmem:[#allocation7] sm:$0xff]
    %v188 = vld [vmem:[#allocation7 + $0x8] sm:$0xff]
    %v189 = vld [vmem:[#allocation7 + $0x10] sm:$0xff]
    %v190 = vld [vmem:[#allocation7 + $0x18] sm:$0xff]
    %v191 = vld [vmem:[#allocation7 + $0x20] sm:$0xff]
    %v192 = vld [vmem:[#allocation7 + $0x28] sm:$0xff]
    %v193 = vld [vmem:[#allocation7 + $0x30] sm:$0xff]
    %v194 = vld [vmem:[#allocation7 + $0x38] sm:$0xff]
    %v195 = vld [vmem:[#allocation7 + $0x40] sm:$0xff]
    %v196 = vld [vmem:[#allocation7 + $0x48] sm:$0xff]
    %v197 = vld [vmem:[#allocation7 + $0x50] sm:$0xff]
    %v198 = vld [vmem:[#allocation7 + $0x58] sm:$0xff]
    %v199 = vld [vmem:[#allocation7 + $0x60] sm:$0xff]
    %v200 = vld [vmem:[#allocation7 + $0x68] sm:$0xff]
    %v201 = vld [vmem:[#allocation7 + $0x70] sm:$0xff]
    %v202 = vld [vmem:[#allocation7 + $0x78] sm:$0xff]
    %v203 = vld [vmem:[%s4] sm:$0x1]
    %v205 = vlaneseq
    %v206 = vshrl.u32 %v205, 7
    %v207 = vsub.s32 0, %v206
    %v208 = vrot.slane %v203, %v207
    %210 = vmatprep.subr.mxu0 0.0
    %211 = vmatpush1.msra.mxu0 %v187
    %212 = vmatprep.subr.mxu0 0.0
    %213 = vmatpush1.msra.mxu0 %v188
    %214 = vmatprep.subr.mxu0 0.0
    %215 = vmatpush1.msra.mxu0 %v189
    %216 = vmatprep.subr.mxu0 0.0
    %217 = vmatpush1.msra.mxu0 %v190
    %218 = vmatprep.subr.mxu0 0.0
    %219 = vmatpush1.msra.mxu0 %v191
    %220 = vmatprep.subr.mxu0 0.0
    %221 = vmatpush1.msra.mxu0 %v192
    %222 = vmatprep.subr.mxu0 0.0
    %223 = vmatpush1.msra.mxu0 %v193
    %224 = vmatprep.subr.mxu0 0.0
    %225 = vmatpush1.msra.mxu0 %v194
    %226 = vmatprep.subr.mxu0 0.0
    %227 = vmatpush1.msra.mxu0 %v195
    %228 = vmatprep.subr.mxu0 0.0
    %229 = vmatpush1.msra.mxu0 %v196
    %230 = vmatprep.subr.mxu0 0.0
    %231 = vmatpush1.msra.mxu0 %v197
    %232 = vmatprep.subr.mxu0 0.0
    %233 = vmatpush1.msra.mxu0 %v198
    %234 = vmatprep.subr.mxu0 0.0
    %235 = vmatpush1.msra.mxu0 %v199
    %236 = vmatprep.subr.mxu0 0.0
    %237 = vmatpush1.msra.mxu0 %v200
    %238 = vmatprep.subr.mxu0 0.0
    %239 = vmatpush1.msra.mxu0 %v201
    %240 = vmatprep.subr.mxu0 0.0
    %241 = vmatpush1.msra.mxu0 %v202
    %242 = vmatprep.subr.mxu0 0.0
    %243 = vmatpush1.msra.mxu0 0.0
    %244 = vmatprep.subr.mxu0 0.0
    %245 = vmatpush1.msra.mxu0 0.0
    %246 = vmatprep.subr.mxu0 0.0
    %247 = vmatpush1.msra.mxu0 0.0
    %248 = vmatprep.subr.mxu0 0.0
    %249 = vmatpush1.msra.mxu0 0.0
    %250 = vmatprep.subr.mxu0 0.0
    %251 = vmatpush1.msra.mxu0 0.0
    %252 = vmatprep.subr.mxu0 0.0
    %253 = vmatpush1.msra.mxu0 0.0
    %254 = vmatprep.subr.mxu0 0.0
    %255 = vmatpush1.msra.mxu0 0.0
    %256 = vmatprep.subr.mxu0 0.0
    %257 = vmatpush1.msra.mxu0 0.0
    %258 = vmatprep.subr.mxu0 0.0
    %259 = vmatpush1.msra.mxu0 0.0
    %260 = vmatprep.subr.mxu0 0.0
    %261 = vmatpush1.msra.mxu0 0.0
    %262 = vmatprep.subr.mxu0 0.0
    %263 = vmatpush1.msra.mxu0 0.0
    %264 = vmatprep.subr.mxu0 0.0
    %265 = vmatpush1.msra.mxu0 0.0
    %266 = vmatprep.subr.mxu0 0.0
    %267 = vmatpush1.msra.mxu0 0.0
    %268 = vmatprep.subr.mxu0 0.0
    %269 = vmatpush1.msra.mxu0 0.0
    %270 = vmatprep.subr.mxu0 0.0
    %271 = vmatpush1.msra.mxu0 0.0
    %272 = vmatprep.subr.mxu0 0.0
    %273 = vmatpush1.msra.mxu0 0.0
    %274 = vmatprep.mubr.f32.mxu0 0.0
    %275 = vmatmul.mubr.f32.gmra.mrb[0].mxu0 %v185
    %v276 = vpop.f32.mrb[0].mxu0
    %v277 = vadd.f32 %v208, %v276
    %v278 = vpop.f32.mrb[0].mxu0
    %279 = vmatprep.mubr.f32.mxu0 0.0
    %280 = vmatmul.mubr.f32.gmra.mrb[0].mxu0 %v186
    %v281 = vpop.f32.mrb[0].mxu0
    %v282 = vadd.f32 %v208, %v281
    %v283 = vpop.f32.mrb[0].mxu0
    %284 = vdwg.mxu0
    %v285 = vmax.f32 %v277, 0.0
    %v286 = vmax.f32 %v282, 0.0
    %287 = vst [vmem:[#allocation11] sm:$0xff] %v285
    %288 = vst [vmem:[#allocation11 + $0x8] sm:$0xff] %v286
    %v289 = vld [vmem:[#allocation8] sm:$0xff]
    %v290 = vld [vmem:[#allocation8 + $0x8] sm:$0xff]
    %v291 = vld [vmem:[#allocation8 + $0x10] sm:$0xff]
    %v292 = vld [vmem:[#allocation8 + $0x18] sm:$0xff]
    %v293 = vld [vmem:[#allocation8 + $0x20] sm:$0xff]
    %v294 = vld [vmem:[#allocation8 + $0x28] sm:$0xff]
    %v295 = vld [vmem:[#allocation8 + $0x30] sm:$0xff]
    %v296 = vld [vmem:[#allocation8 + $0x38] sm:$0xff]
    %v297 = vld [vmem:[#allocation8 + $0x40] sm:$0xff]
    %v298 = vld [vmem:[#allocation8 + $0x48] sm:$0xff]
    %v299 = vld [vmem:[#allocation8 + $0x50] sm:$0xff]
    %v300 = vld [vmem:[#allocation8 + $0x58] sm:$0xff]
    %v301 = vld [vmem:[#allocation8 + $0x60] sm:$0xff]
    %v302 = vld [vmem:[#allocation8 + $0x68] sm:$0xff]
    %v303 = vld [vmem:[#allocation8 + $0x70] sm:$0xff]
    %v304 = vld [vmem:[#allocation8 + $0x78] sm:$0xff]
    %v305 = vld [vmem:[%s6] sm:$0x1]
    %v307 = vlaneseq
    %v308 = vshrl.u32 %v307, 7
    %v309 = vsub.s32 0, %v308
    %v310 = vrot.slane %v305, %v309
    %312 = vmatprep.subr.mxu0 0.0
    %313 = vmatpush1.msra.mxu0 %v289
    %314 = vmatprep.subr.mxu0 0.0
    %315 = vmatpush1.msra.mxu0 %v290
    %316 = vmatprep.subr.mxu0 0.0
    %317 = vmatpush1.msra.mxu0 %v291
    %318 = vmatprep.subr.mxu0 0.0
    %319 = vmatpush1.msra.mxu0 %v292
    %320 = vmatprep.subr.mxu0 0.0
    %321 = vmatpush1.msra.mxu0 %v293
    %322 = vmatprep.subr.mxu0 0.0
    %323 = vmatpush1.msra.mxu0 %v294
    %324 = vmatprep.subr.mxu0 0.0
    %325 = vmatpush1.msra.mxu0 %v295
    %326 = vmatprep.subr.mxu0 0.0
    %327 = vmatpush1.msra.mxu0 %v296
    %328 = vmatprep.subr.mxu0 0.0
    %329 = vmatpush1.msra.mxu0 %v297
    %330 = vmatprep.subr.mxu0 0.0
    %331 = vmatpush1.msra.mxu0 %v298
    %332 = vmatprep.subr.mxu0 0.0
    %333 = vmatpush1.msra.mxu0 %v299
    %334 = vmatprep.subr.mxu0 0.0
    %335 = vmatpush1.msra.mxu0 %v300
    %336 = vmatprep.subr.mxu0 0.0
    %337 = vmatpush1.msra.mxu0 %v301
    %338 = vmatprep.subr.mxu0 0.0
    %339 = vmatpush1.msra.mxu0 %v302
    %340 = vmatprep.subr.mxu0 0.0
    %341 = vmatpush1.msra.mxu0 %v303
    %342 = vmatprep.subr.mxu0 0.0
    %343 = vmatpush1.msra.mxu0 %v304
    %344 = vmatprep.subr.mxu0 0.0
    %345 = vmatpush1.msra.mxu0 0.0
    %346 = vmatprep.subr.mxu0 0.0
    %347 = vmatpush1.msra.mxu0 0.0
    %348 = vmatprep.subr.mxu0 0.0
    %349 = vmatpush1.msra.mxu0 0.0
    %350 = vmatprep.subr.mxu0 0.0
    %351 = vmatpush1.msra.mxu0 0.0
    %352 = vmatprep.subr.mxu0 0.0
    %353 = vmatpush1.msra.mxu0 0.0
    %354 = vmatprep.subr.mxu0 0.0
    %355 = vmatpush1.msra.mxu0 0.0
    %356 = vmatprep.subr.mxu0 0.0
    %357 = vmatpush1.msra.mxu0 0.0
    %358 = vmatprep.subr.mxu0 0.0
    %359 = vmatpush1.msra.mxu0 0.0
    %360 = vmatprep.subr.mxu0 0.0
    %361 = vmatpush1.msra.mxu0 0.0
    %362 = vmatprep.subr.mxu0 0.0
    %363 = vmatpush1.msra.mxu0 0.0
    %364 = vmatprep.subr.mxu0 0.0
    %365 = vmatpush1.msra.mxu0 0.0
    %366 = vmatprep.subr.mxu0 0.0
    %367 = vmatpush1.msra.mxu0 0.0
    %368 = vmatprep.subr.mxu0 0.0
    %369 = vmatpush1.msra.mxu0 0.0
    %370 = vmatprep.subr.mxu0 0.0
    %371 = vmatpush1.msra.mxu0 0.0
    %372 = vmatprep.subr.mxu0 0.0
    %373 = vmatpush1.msra.mxu0 0.0
    %374 = vmatprep.subr.mxu0 0.0
    %375 = vmatpush1.msra.mxu0 0.0
    %376 = vmatprep.mubr.f32.mxu0 0.0
    %377 = vmatmul.mubr.f32.gmra.mrb[0].mxu0 %v285
    %v378 = vpop.f32.mrb[0].mxu0
    %v379 = vadd.f32 %v310, %v378
    %v380 = vpop.f32.mrb[0].mxu0
    %381 = vmatprep.mubr.f32.mxu0 0.0
    %382 = vmatmul.mubr.f32.gmra.mrb[0].mxu0 %v286
    %v383 = vpop.f32.mrb[0].mxu0
    %v384 = vadd.f32 %v310, %v383
    %v385 = vpop.f32.mrb[0].mxu0
    %386 = vdwg.mxu0
    %387 = vst [vmem:[#allocation10] sm:$0xff] %v379
    %388 = vst [vmem:[#allocation10 + $0x8] sm:$0xff] %v384
    // Predicated region
    $region46: #{tpu_custom_call.1} parent=1 // pred_check
      _
    $region47: #{tpu_custom_call.1} parent=1 // pred_check_branch
      %390 = sbr.rel (0) target = $region49
    $region48: #{tpu_custom_call.1} parent=1 // pred_region
      %s392 = ssub.s32 256, 256
      %393 = vsyncadd [#allocation4], %s392
      %s394 = sshll.u32 [#allocation10], 4
      %s395 = int_to_ptr.vmem [resolvable:$true] %s394
      %400 = dma.vmem_to_hbm [thread:$0]  %s395, 256, %s7, [#allocation4], 128, 128, 8
    $region49: #{tpu_custom_call.1} parent=1 // pred_fallthru
      _
    // Predicated region
    $region50: #{tpu_custom_call.1} parent=1 // pred_check
      _
    $region51: #{tpu_custom_call.1} parent=1 // pred_check_branch
      %402 = sbr.rel (0) target = $region53
    $region52: #{tpu_custom_call.1} parent=1 // pred_region
      %s404 = ssub.s32 256, 256
      %405 = vsyncadd [#allocation12], %s404
      %s406 = sshll.u32 [#allocation11], 4
      %s407 = int_to_ptr.vmem [resolvable:$true] %s406
      %412 = dma.vmem_to_hbm [thread:$0]  %s407, 256, %s8, [#allocation12], 128, 128, 8
    $region53: #{tpu_custom_call.1} parent=1 // pred_fallthru
      _
    // Predicated region
    $region54: #{tpu_custom_call.1} parent=1 // pred_check
      _
    $region55: #{tpu_custom_call.1} parent=1 // pred_check_branch
      %414 = sbr.rel (0) target = $region57
    $region56: #{tpu_custom_call.1} parent=1 // pred_region
      %415 = dma.done [#allocation4], 256
    $region57: #{tpu_custom_call.1} parent=1 // pred_fallthru
      _
    // Predicated region
    $region58: #{tpu_custom_call.1} parent=1 // pred_check
      _
    $region59: #{tpu_custom_call.1} parent=1 // pred_check_branch
      %417 = sbr.rel (0) target = $region61
    $region60: #{tpu_custom_call.1} parent=1 // pred_region
      %418 = dma.done [#allocation12], 256
    $region61: #{tpu_custom_call.1} parent=1 // pred_fallthru
      _
    %419 = vsyncpa [#allocation3], 1
    %420 = vsyncpa [#allocation6], 1
    %421 = vsyncpa [#allocation9], 1
    %422 = vsyncpa [#allocation4], 1
    %423 = vsyncpa [#allocation12], 1

// kernel: tpu_custom_call.1
$region0: #{tpu_custom_call.1}
  #allocation0 [shape = 'u32[]', space=smem, size = 0x4, offset = 0x4, fixed_abs, tag = 'smem constant byte address 0x4 - core index']
  #allocation1 [shape = 'u32[144,128]{1,0:T(1,128)}', space=vmem, size = 0x12000, scoped, tag = 'internal scratch']
  %s0 = inlined_call_operand.hbm [shape: f32[16,128], index: 0, kind: input, shape index: {}]
  %s1 = inlined_call_operand.hbm [shape: f32[128,128], index: 1, kind: input, shape index: {}]
  %s2 = inlined_call_operand.vmem [shape: f32[1,128], index: 2, kind: input, shape index: {}]
  %s3 = inlined_call_operand.hbm [shape: f32[128,128], index: 3, kind: input, shape index: {}]
  %s4 = inlined_call_operand.vmem [shape: f32[1,128], index: 4, kind: input, shape index: {}]
  %s5 = inlined_call_operand.hbm [shape: f32[128,128], index: 5, kind: input, shape index: {}]
  %s6 = inlined_call_operand.vmem [shape: f32[1,128], index: 6, kind: input, shape index: {}]
  %s7 = inlined_call_operand.hbm [shape: f32[16,128], index: 7, kind: output, shape index: {0}]
  %s8 = inlined_call_operand.hbm [shape: f32[16,128], index: 8, kind: output, shape index: {1}]
  %9 = xla_tuple %s7, %s8
  %s10 = sld [smem:[#allocation0]]
  $region62: #{tpu_custom_call.1} parent=0
    _
  %s12 = ssub.s32 1, %s10
  %s13 = scalar_select 0, %s12, %s10
  $region1: #{tpu_custom_call.1} parent=0
    #allocation2 [shape = 'u8[8192]{0}', space=vmem, size = 0x2000, scoped, tag = 'input window, operand 0, single buffered']
    #allocation3 [shape = 's32[1]{0}', space=sflag, size = 0x4, scoped, tag = 'scoped memory for tpu_custom_call.1']
    #allocation4 [shape = 's32[1]{0}', space=sflag, size = 0x4, scoped, tag = 'scoped memory for tpu_custom_call.1']
    #allocation5 [shape = 'u8[65536]{0}', space=vmem, size = 0x10000, scoped, tag = 'input window, operand 1, single buffered']
    #allocation6 [shape = 's32[1]{0}', space=sflag, size = 0x4, scoped, tag = 'scoped memory for tpu_custom_call.1']
    #allocation7 [shape = 'u8[65536]{0}', space=vmem, size = 0x10000, scoped, tag = 'input window, operand 3, single buffered']
    #allocation8 [shape = 'u8[65536]{0}', space=vmem, size = 0x10000, scoped, tag = 'input window, operand 5, single buffered']
    #allocation9 [shape = 's32[1]{0}', space=sflag, size = 0x4, scoped, tag = 'scoped memory for tpu_custom_call.1']
    #allocation10 [shape = 'u8[8192]{0}', space=vmem, size = 0x2000, scoped, tag = 'output window, operand 0, single buffered']
    #allocation11 [shape = 'u8[8192]{0}', space=vmem, size = 0x2000, scoped, tag = 'output window, operand 1, single buffered']
    #allocation12 [shape = 's32[1]{0}', space=sflag, size = 0x4, scoped, tag = 'scoped memory for tpu_custom_call.1']
    %14 = vsyncpa [#allocation3], 0
    %15 = vsyncpa [#allocation6], 0
    %16 = vsyncpa [#allocation9], 0
    %17 = vsyncpa [#allocation4], 0
    %18 = vsyncpa [#allocation12], 0
    // Predicated region
    $region2: #{tpu_custom_call.1} parent=1 // pred_check
      _
    $region3: #{tpu_custom_call.1} parent=1 // pred_check_branch
      %20 = sbr.rel (0) target = $region5
    $region4: #{tpu_custom_call.1} parent=1 // pred_region
      %s22 = ssub.s32 256, 256
      %23 = vsyncadd [#allocation3], %s22
      %s24 = sshll.u32 [#allocation2], 4
      %s25 = int_to_ptr.vmem [resolvable:$true] %s24
      %30 = dma.hbm_to_vmem [thread:$0]  %s0, 256, %s25, [#allocation3], 128, 128, 8
    $region5: #{tpu_custom_call.1} parent=1 // pred_fallthru
      _
    // Predicated region
    $region6: #{tpu_custom_call.1} parent=1 // pred_check
      _
    $region7: #{tpu_custom_call.1} parent=1 // pred_check_branch
      %32 = sbr.rel (0) target = $region9
    $region8: #{tpu_custom_call.1} parent=1 // pred_region
      %s34 = ssub.s32 2048, 2048
      %35 = vsyncadd [#allocation6], %s34
      %s36 = sshll.u32 [#allocation5], 4
      %s37 = int_to_ptr.vmem [resolvable:$true] %s36
      %42 = dma.hbm_to_vmem [thread:$0]  %s1, 2048, %s37, [#allocation6], 128, 128, 8
    $region9: #{tpu_custom_call.1} parent=1 // pred_fallthru
      _
    // Predicated region
    $region10: #{tpu_custom_call.1} parent=1 // pred_check
      _
    $region11: #{tpu_custom_call.1} parent=1 // pred_check_branch
      %44 = sbr.rel (0) target = $region13
    $region12: #{tpu_custom_call.1} parent=1 // pred_region
      _
    $region13: #{tpu_custom_call.1} parent=1 // pred_fallthru
      _
    // Predicated region
    $region14: #{tpu_custom_call.1} parent=1 // pred_check
      _
    $region15: #{tpu_custom_call.1} parent=1 // pred_check_branch
      %46 = sbr.rel (0) target = $region17
    $region16: #{tpu_custom_call.1} parent=1 // pred_region
      %s48 = ssub.s32 2048, 2048
      %49 = vsyncadd [#allocation6], %s48
      %s50 = sshll.u32 [#allocation7], 4
      %s51 = int_to_ptr.vmem [resolvable:$true] %s50
      %56 = dma.hbm_to_vmem [thread:$0]  %s3, 2048, %s51, [#allocation6], 128, 128, 8
    $region17: #{tpu_custom_call.1} parent=1 // pred_fallthru
      _
    // Predicated region
    $region18: #{tpu_custom_call.1} parent=1 // pred_check
      _
    $region19: #{tpu_custom_call.1} parent=1 // pred_check_branch
      %58 = sbr.rel (0) target = $region21
    $region20: #{tpu_custom_call.1} parent=1 // pred_region
      _
    $region21: #{tpu_custom_call.1} parent=1 // pred_fallthru
      _
    // Predicated region
    $region22: #{tpu_custom_call.1} parent=1 // pred_check
      _
    $region23: #{tpu_custom_call.1} parent=1 // pred_check_branch
      %60 = sbr.rel (0) target = $region25
    $region24: #{tpu_custom_call.1} parent=1 // pred_region
      %s62 = ssub.s32 2048, 2048
      %63 = vsyncadd [#allocation9], %s62
      %s64 = sshll.u32 [#allocation8], 4
      %s65 = int_to_ptr.vmem [resolvable:$true] %s64
      %70 = dma.hbm_to_vmem [thread:$0]  %s5, 2048, %s65, [#allocation9], 128, 128, 8
    $region25: #{tpu_custom_call.1} parent=1 // pred_fallthru
      _
    // Predicated region
    $region26: #{tpu_custom_call.1} parent=1 // pred_check
      _
    $region27: #{tpu_custom_call.1} parent=1 // pred_check_branch
      %72 = sbr.rel (0) target = $region29
    $region28: #{tpu_custom_call.1} parent=1 // pred_region
      _
    $region29: #{tpu_custom_call.1} parent=1 // pred_fallthru
      _
    // Predicated region
    $region30: #{tpu_custom_call.1} parent=1 // pred_check
      _
    $region31: #{tpu_custom_call.1} parent=1 // pred_check_branch
      %74 = sbr.rel (0) target = $region33
    $region32: #{tpu_custom_call.1} parent=1 // pred_region
      %75 = dma.done [#allocation3], 256
    $region33: #{tpu_custom_call.1} parent=1 // pred_fallthru
      _
    // Predicated region
    $region34: #{tpu_custom_call.1} parent=1 // pred_check
      _
    $region35: #{tpu_custom_call.1} parent=1 // pred_check_branch
      %77 = sbr.rel (0) target = $region37
    $region36: #{tpu_custom_call.1} parent=1 // pred_region
      %78 = dma.done [#allocation6], 2048
    $region37: #{tpu_custom_call.1} parent=1 // pred_fallthru
      _
    // Predicated region
    $region38: #{tpu_custom_call.1} parent=1 // pred_check
      _
    $region39: #{tpu_custom_call.1} parent=1 // pred_check_branch
      %80 = sbr.rel (0) target = $region41
    $region40: #{tpu_custom_call.1} parent=1 // pred_region
      %81 = dma.done [#allocation6], 2048
    $region41: #{tpu_custom_call.1} parent=1 // pred_fallthru
      _
    // Predicated region
    $region42: #{tpu_custom_call.1} parent=1 // pred_check
      _
    $region43: #{tpu_custom_call.1} parent=1 // pred_check_branch
      %83 = sbr.rel (0) target = $region45
    $region44: #{tpu_custom_call.1} parent=1 // pred_region
      %84 = dma.done [#allocation9], 2048
    $region45: #{tpu_custom_call.1} parent=1 // pred_fallthru
      _
    %v85 = vld [vmem:[#allocation2] sm:$0xff]
    %v86 = vld [vmem:[#allocation2 + $0x8] sm:$0xff]
    %v87 = vld [vmem:[#allocation5] sm:$0xff]
    %v88 = vld [vmem:[#allocation5 + $0x8] sm:$0xff]
    %v89 = vld [vmem:[#allocation5 + $0x10] sm:$0xff]
    %v90 = vld [vmem:[#allocation5 + $0x18] sm:$0xff]
    %v91 = vld [vmem:[#allocation5 + $0x20] sm:$0xff]
    %v92 = vld [vmem:[#allocation5 + $0x28] sm:$0xff]
    %v93 = vld [vmem:[#allocation5 + $0x30] sm:$0xff]
    %v94 = vld [vmem:[#allocation5 + $0x38] sm:$0xff]
    %v95 = vld [vmem:[#allocation5 + $0x40] sm:$0xff]
    %v96 = vld [vmem:[#allocation5 + $0x48] sm:$0xff]
    %v97 = vld [vmem:[#allocation5 + $0x50] sm:$0xff]
    %v98 = vld [vmem:[#allocation5 + $0x58] sm:$0xff]
    %v99 = vld [vmem:[#allocation5 + $0x60] sm:$0xff]
    %v100 = vld [vmem:[#allocation5 + $0x68] sm:$0xff]
    %v101 = vld [vmem:[#allocation5 + $0x70] sm:$0xff]
    %v102 = vld [vmem:[#allocation5 + $0x78] sm:$0xff]
    %v103 = vld [vmem:[%s2] sm:$0x1]
    %v105 = vlaneseq
    %v106 = vshrl.u32 %v105, 7
    %v107 = vsub.s32 0, %v106
    %v108 = vrot.slane %v103, %v107
    %110 = vmatprep.subr.mxu0 0.0
    %111 = vmatpush1.msra.mxu0 %v87
    %112 = vmatprep.subr.mxu0 0.0
    %113 = vmatpush1.msra.mxu0 %v88
    %114 = vmatprep.subr.mxu0 0.0
    %115 = vmatpush1.msra.mxu0 %v89
    %116 = vmatprep.subr.mxu0 0.0
    %117 = vmatpush1.msra.mxu0 %v90
    %118 = vmatprep.subr.mxu0 0.0
    %119 = vmatpush1.msra.mxu0 %v91
    %120 = vmatprep.subr.mxu0 0.0
    %121 = vmatpush1.msra.mxu0 %v92
    %122 = vmatprep.subr.mxu0 0.0
    %123 = vmatpush1.msra.mxu0 %v93
    %124 = vmatprep.subr.mxu0 0.0
    %125 = vmatpush1.msra.mxu0 %v94
    %126 = vmatprep.subr.mxu0 0.0
    %127 = vmatpush1.msra.mxu0 %v95
    %128 = vmatprep.subr.mxu0 0.0
    %129 = vmatpush1.msra.mxu0 %v96
    %130 = vmatprep.subr.mxu0 0.0
    %131 = vmatpush1.msra.mxu0 %v97
    %132 = vmatprep.subr.mxu0 0.0
    %133 = vmatpush1.msra.mxu0 %v98
    %134 = vmatprep.subr.mxu0 0.0
    %135 = vmatpush1.msra.mxu0 %v99
    %136 = vmatprep.subr.mxu0 0.0
    %137 = vmatpush1.msra.mxu0 %v100
    %138 = vmatprep.subr.mxu0 0.0
    %139 = vmatpush1.msra.mxu0 %v101
    %140 = vmatprep.subr.mxu0 0.0
    %141 = vmatpush1.msra.mxu0 %v102
    %142 = vmatprep.subr.mxu0 0.0
    %143 = vmatpush1.msra.mxu0 0.0
    %144 = vmatprep.subr.mxu0 0.0
    %145 = vmatpush1.msra.mxu0 0.0
    %146 = vmatprep.subr.mxu0 0.0
    %147 = vmatpush1.msra.mxu0 0.0
    %148 = vmatprep.subr.mxu0 0.0
    %149 = vmatpush1.msra.mxu0 0.0
    %150 = vmatprep.subr.mxu0 0.0
    %151 = vmatpush1.msra.mxu0 0.0
    %152 = vmatprep.subr.mxu0 0.0
    %153 = vmatpush1.msra.mxu0 0.0
    %154 = vmatprep.subr.mxu0 0.0
    %155 = vmatpush1.msra.mxu0 0.0
    %156 = vmatprep.subr.mxu0 0.0
    %157 = vmatpush1.msra.mxu0 0.0
    %158 = vmatprep.subr.mxu0 0.0
    %159 = vmatpush1.msra.mxu0 0.0
    %160 = vmatprep.subr.mxu0 0.0
    %161 = vmatpush1.msra.mxu0 0.0
    %162 = vmatprep.subr.mxu0 0.0
    %163 = vmatpush1.msra.mxu0 0.0
    %164 = vmatprep.subr.mxu0 0.0
    %165 = vmatpush1.msra.mxu0 0.0
    %166 = vmatprep.subr.mxu0 0.0
    %167 = vmatpush1.msra.mxu0 0.0
    %168 = vmatprep.subr.mxu0 0.0
    %169 = vmatpush1.msra.mxu0 0.0
    %170 = vmatprep.subr.mxu0 0.0
    %171 = vmatpush1.msra.mxu0 0.0
    %172 = vmatprep.subr.mxu0 0.0
    %173 = vmatpush1.msra.mxu0 0.0
    %174 = vmatprep.mubr.f32.mxu0 0.0
    %175 = vmatmul.mubr.f32.gmra.mrb[0].mxu0 %v85
    %v176 = vpop.f32.mrb[0].mxu0
    %v177 = vadd.f32 %v108, %v176
    %v178 = vpop.f32.mrb[0].mxu0
    %179 = vmatprep.mubr.f32.mxu0 0.0
    %180 = vmatmul.mubr.f32.gmra.mrb[0].mxu0 %v86
    %v181 = vpop.f32.mrb[0].mxu0
    %v182 = vadd.f32 %v108, %v181
    %v183 = vpop.f32.mrb[0].mxu0
    %184 = vdwg.mxu0
    %v185 = vmax.f32 %v177, 0.0
    %v186 = vmax.f32 %v182, 0.0
    %v187 = vld [vmem:[#allocation7] sm:$0xff]
    %v188 = vld [vmem:[#allocation7 + $0x8] sm:$0xff]
    %v189 = vld [vmem:[#allocation7 + $0x10] sm:$0xff]
    %v190 = vld [vmem:[#allocation7 + $0x18] sm:$0xff]
    %v191 = vld [vmem:[#allocation7 + $0x20] sm:$0xff]
    %v192 = vld [vmem:[#allocation7 + $0x28] sm:$0xff]
    %v193 = vld [vmem:[#allocation7 + $0x30] sm:$0xff]
    %v194 = vld [vmem:[#allocation7 + $0x38] sm:$0xff]
    %v195 = vld [vmem:[#allocation7 + $0x40] sm:$0xff]
    %v196 = vld [vmem:[#allocation7 + $0x48] sm:$0xff]
    %v197 = vld [vmem:[#allocation7 + $0x50] sm:$0xff]
    %v198 = vld [vmem:[#allocation7 + $0x58] sm:$0xff]
    %v199 = vld [vmem:[#allocation7 + $0x60] sm:$0xff]
    %v200 = vld [vmem:[#allocation7 + $0x68] sm:$0xff]
    %v201 = vld [vmem:[#allocation7 + $0x70] sm:$0xff]
    %v202 = vld [vmem:[#allocation7 + $0x78] sm:$0xff]
    %v203 = vld [vmem:[%s4] sm:$0x1]
    %v205 = vlaneseq
    %v206 = vshrl.u32 %v205, 7
    %v207 = vsub.s32 0, %v206
    %v208 = vrot.slane %v203, %v207
    %210 = vmatprep.subr.mxu0 0.0
    %211 = vmatpush1.msra.mxu0 %v187
    %212 = vmatprep.subr.mxu0 0.0
    %213 = vmatpush1.msra.mxu0 %v188
    %214 = vmatprep.subr.mxu0 0.0
    %215 = vmatpush1.msra.mxu0 %v189
    %216 = vmatprep.subr.mxu0 0.0
    %217 = vmatpush1.msra.mxu0 %v190
    %218 = vmatprep.subr.mxu0 0.0
    %219 = vmatpush1.msra.mxu0 %v191
    %220 = vmatprep.subr.mxu0 0.0
    %221 = vmatpush1.msra.mxu0 %v192
    %222 = vmatprep.subr.mxu0 0.0
    %223 = vmatpush1.msra.mxu0 %v193
    %224 = vmatprep.subr.mxu0 0.0
    %225 = vmatpush1.msra.mxu0 %v194
    %226 = vmatprep.subr.mxu0 0.0
    %227 = vmatpush1.msra.mxu0 %v195
    %228 = vmatprep.subr.mxu0 0.0
    %229 = vmatpush1.msra.mxu0 %v196
    %230 = vmatprep.subr.mxu0 0.0
    %231 = vmatpush1.msra.mxu0 %v197
    %232 = vmatprep.subr.mxu0 0.0
    %233 = vmatpush1.msra.mxu0 %v198
    %234 = vmatprep.subr.mxu0 0.0
    %235 = vmatpush1.msra.mxu0 %v199
    %236 = vmatprep.subr.mxu0 0.0
    %237 = vmatpush1.msra.mxu0 %v200
    %238 = vmatprep.subr.mxu0 0.0
    %239 = vmatpush1.msra.mxu0 %v201
    %240 = vmatprep.subr.mxu0 0.0
    %241 = vmatpush1.msra.mxu0 %v202
    %242 = vmatprep.subr.mxu0 0.0
    %243 = vmatpush1.msra.mxu0 0.0
    %244 = vmatprep.subr.mxu0 0.0
    %245 = vmatpush1.msra.mxu0 0.0
    %246 = vmatprep.subr.mxu0 0.0
    %247 = vmatpush1.msra.mxu0 0.0
    %248 = vmatprep.subr.mxu0 0.0
    %249 = vmatpush1.msra.mxu0 0.0
    %250 = vmatprep.subr.mxu0 0.0
    %251 = vmatpush1.msra.mxu0 0.0
    %252 = vmatprep.subr.mxu0 0.0
    %253 = vmatpush1.msra.mxu0 0.0
    %254 = vmatprep.subr.mxu0 0.0
    %255 = vmatpush1.msra.mxu0 0.0
    %256 = vmatprep.subr.mxu0 0.0
    %257 = vmatpush1.msra.mxu0 0.0
    %258 = vmatprep.subr.mxu0 0.0
    %259 = vmatpush1.msra.mxu0 0.0
    %260 = vmatprep.subr.mxu0 0.0
    %261 = vmatpush1.msra.mxu0 0.0
    %262 = vmatprep.subr.mxu0 0.0
    %263 = vmatpush1.msra.mxu0 0.0
    %264 = vmatprep.subr.mxu0 0.0
    %265 = vmatpush1.msra.mxu0 0.0
    %266 = vmatprep.subr.mxu0 0.0
    %267 = vmatpush1.msra.mxu0 0.0
    %268 = vmatprep.subr.mxu0 0.0
    %269 = vmatpush1.msra.mxu0 0.0
    %270 = vmatprep.subr.mxu0 0.0
    %271 = vmatpush1.msra.mxu0 0.0
    %272 = vmatprep.subr.mxu0 0.0
    %273 = vmatpush1.msra.mxu0 0.0
    %274 = vmatprep.mubr.f32.mxu0 0.0
    %275 = vmatmul.mubr.f32.gmra.mrb[0].mxu0 %v185
    %v276 = vpop.f32.mrb[0].mxu0
    %v277 = vadd.f32 %v208, %v276
    %v278 = vpop.f32.mrb[0].mxu0
    %279 = vmatprep.mubr.f32.mxu0 0.0
    %280 = vmatmul.mubr.f32.gmra.mrb[0].mxu0 %v186
    %v281 = vpop.f32.mrb[0].mxu0
    %v282 = vadd.f32 %v208, %v281
    %v283 = vpop.f32.mrb[0].mxu0
    %284 = vdwg.mxu0
    %v285 = vmax.f32 %v277, 0.0
    %v286 = vmax.f32 %v282, 0.0
    %287 = vst [vmem:[#allocation11] sm:$0xff] %v285
    %288 = vst [vmem:[#allocation11 + $0x8] sm:$0xff] %v286
    %v289 = vld [vmem:[#allocation8] sm:$0xff]
    %v290 = vld [vmem:[#allocation8 + $0x8] sm:$0xff]
    %v291 = vld [vmem:[#allocation8 + $0x10] sm:$0xff]
    %v292 = vld [vmem:[#allocation8 + $0x18] sm:$0xff]
    %v293 = vld [vmem:[#allocation8 + $0x20] sm:$0xff]
    %v294 = vld [vmem:[#allocation8 + $0x28] sm:$0xff]
    %v295 = vld [vmem:[#allocation8 + $0x30] sm:$0xff]
    %v296 = vld [vmem:[#allocation8 + $0x38] sm:$0xff]
    %v297 = vld [vmem:[#allocation8 + $0x40] sm:$0xff]
    %v298 = vld [vmem:[#allocation8 + $0x48] sm:$0xff]
    %v299 = vld [vmem:[#allocation8 + $0x50] sm:$0xff]
    %v300 = vld [vmem:[#allocation8 + $0x58] sm:$0xff]
    %v301 = vld [vmem:[#allocation8 + $0x60] sm:$0xff]
    %v302 = vld [vmem:[#allocation8 + $0x68] sm:$0xff]
    %v303 = vld [vmem:[#allocation8 + $0x70] sm:$0xff]
    %v304 = vld [vmem:[#allocation8 + $0x78] sm:$0xff]
    %v305 = vld [vmem:[%s6] sm:$0x1]
    %v307 = vlaneseq
    %v308 = vshrl.u32 %v307, 7
    %v309 = vsub.s32 0, %v308
    %v310 = vrot.slane %v305, %v309
    %312 = vmatprep.subr.mxu0 0.0
    %313 = vmatpush1.msra.mxu0 %v289
    %314 = vmatprep.subr.mxu0 0.0
    %315 = vmatpush1.msra.mxu0 %v290
    %316 = vmatprep.subr.mxu0 0.0
    %317 = vmatpush1.msra.mxu0 %v291
    %318 = vmatprep.subr.mxu0 0.0
    %319 = vmatpush1.msra.mxu0 %v292
    %320 = vmatprep.subr.mxu0 0.0
    %321 = vmatpush1.msra.mxu0 %v293
    %322 = vmatprep.subr.mxu0 0.0
    %323 = vmatpush1.msra.mxu0 %v294
    %324 = vmatprep.subr.mxu0 0.0
    %325 = vmatpush1.msra.mxu0 %v295
    %326 = vmatprep.subr.mxu0 0.0
    %327 = vmatpush1.msra.mxu0 %v296
    %328 = vmatprep.subr.mxu0 0.0
    %329 = vmatpush1.msra.mxu0 %v297
    %330 = vmatprep.subr.mxu0 0.0
    %331 = vmatpush1.msra.mxu0 %v298
    %332 = vmatprep.subr.mxu0 0.0
    %333 = vmatpush1.msra.mxu0 %v299
    %334 = vmatprep.subr.mxu0 0.0
    %335 = vmatpush1.msra.mxu0 %v300
    %336 = vmatprep.subr.mxu0 0.0
    %337 = vmatpush1.msra.mxu0 %v301
    %338 = vmatprep.subr.mxu0 0.0
    %339 = vmatpush1.msra.mxu0 %v302
    %340 = vmatprep.subr.mxu0 0.0
    %341 = vmatpush1.msra.mxu0 %v303
    %342 = vmatprep.subr.mxu0 0.0
    %343 = vmatpush1.msra.mxu0 %v304
    %344 = vmatprep.subr.mxu0 0.0
    %345 = vmatpush1.msra.mxu0 0.0
    %346 = vmatprep.subr.mxu0 0.0
    %347 = vmatpush1.msra.mxu0 0.0
    %348 = vmatprep.subr.mxu0 0.0
    %349 = vmatpush1.msra.mxu0 0.0
    %350 = vmatprep.subr.mxu0 0.0
    %351 = vmatpush1.msra.mxu0 0.0
    %352 = vmatprep.subr.mxu0 0.0
    %353 = vmatpush1.msra.mxu0 0.0
    %354 = vmatprep.subr.mxu0 0.0
    %355 = vmatpush1.msra.mxu0 0.0
    %356 = vmatprep.subr.mxu0 0.0
    %357 = vmatpush1.msra.mxu0 0.0
    %358 = vmatprep.subr.mxu0 0.0
    %359 = vmatpush1.msra.mxu0 0.0
    %360 = vmatprep.subr.mxu0 0.0
    %361 = vmatpush1.msra.mxu0 0.0
    %362 = vmatprep.subr.mxu0 0.0
    %363 = vmatpush1.msra.mxu0 0.0
    %364 = vmatprep.subr.mxu0 0.0
    %365 = vmatpush1.msra.mxu0 0.0
    %366 = vmatprep.subr.mxu0 0.0
    %367 = vmatpush1.msra.mxu0 0.0
    %368 = vmatprep.subr.mxu0 0.0
    %369 = vmatpush1.msra.mxu0 0.0
    %370 = vmatprep.subr.mxu0 0.0
    %371 = vmatpush1.msra.mxu0 0.0
    %372 = vmatprep.subr.mxu0 0.0
    %373 = vmatpush1.msra.mxu0 0.0
    %374 = vmatprep.subr.mxu0 0.0
    %375 = vmatpush1.msra.mxu0 0.0
    %376 = vmatprep.mubr.f32.mxu0 0.0
    %377 = vmatmul.mubr.f32.gmra.mrb[0].mxu0 %v285
    %v378 = vpop.f32.mrb[0].mxu0
    %v379 = vadd.f32 %v310, %v378
    %v380 = vpop.f32.mrb[0].mxu0
    %381 = vmatprep.mubr.f32.mxu0 0.0
    %382 = vmatmul.mubr.f32.gmra.mrb[0].mxu0 %v286
    %v383 = vpop.f32.mrb[0].mxu0
    %v384 = vadd.f32 %v310, %v383
    %v385 = vpop.f32.mrb[0].mxu0
    %386 = vdwg.mxu0
    %387 = vst [vmem:[#allocation10] sm:$0xff] %v379
    %388 = vst [vmem:[#allocation10 + $0x8] sm:$0xff] %v384
    // Predicated region
    $region46: #{tpu_custom_call.1} parent=1 // pred_check
      _
    $region47: #{tpu_custom_call.1} parent=1 // pred_check_branch
      %390 = sbr.rel (0) target = $region49
    $region48: #{tpu_custom_call.1} parent=1 // pred_region
      %s392 = ssub.s32 256, 256
      %393 = vsyncadd [#allocation4], %s392
      %s394 = sshll.u32 [#allocation10], 4
      %s395 = int_to_ptr.vmem [resolvable:$true] %s394
      %400 = dma.vmem_to_hbm [thread:$0]  %s395, 256, %s7, [#allocation4], 128, 128, 8
    $region49: #{tpu_custom_call.1} parent=1 // pred_fallthru
      _
    // Predicated region
    $region50: #{tpu_custom_call.1} parent=1 // pred_check
      _
    $region51: #{tpu_custom_call.1} parent=1 // pred_check_branch
      %402 = sbr.rel (0) target = $region53
    $region52: #{tpu_custom_call.1} parent=1 // pred_region
      %s404 = ssub.s32 256, 256
      %405 = vsyncadd [#allocation12], %s404
      %s406 = sshll.u32 [#allocation11], 4
      %s407 = int_to_ptr.vmem [resolvable:$true] %s406
      %412 = dma.vmem_to_hbm [thread:$0]  %s407, 256, %s8, [#allocation12], 128, 128, 8
    $region53: #{tpu_custom_call.1} parent=1 // pred_fallthru
      _
    // Predicated region
    $region54: #{tpu_custom_call.1} parent=1 // pred_check
      _
    $region55: #{tpu_custom_call.1} parent=1 // pred_check_branch
      %414 = sbr.rel (0) target = $region57
    $region56: #{tpu_custom_call.1} parent=1 // pred_region
      %415 = dma.done [#allocation4], 256
    $region57: #{tpu_custom_call.1} parent=1 // pred_fallthru
      _
    // Predicated region
    $region58: #{tpu_custom_call.1} parent=1 // pred_check
      _
    $region59: #{tpu_custom_call.1} parent=1 // pred_check_branch
      %417 = sbr.rel (0) target = $region61
    $region60: #{tpu_custom_call.1} parent=1 // pred_region
      %418 = dma.done [#allocation12], 256
    $region61: #{tpu_custom_call.1} parent=1 // pred_fallthru
      _
    %419 = vsyncpa [#allocation3], 1
    %420 = vsyncpa [#allocation6], 1
    %421 = vsyncpa [#allocation9], 1
    %422 = vsyncpa [#allocation4], 1
    %423 = vsyncpa [#allocation12], 1

</llo_original>
